<compile_context>
chip_gen: v7x
topology: tpu7x:2x2x1
jax: 0.10.0
libtpu: 0.0.40
codegen_flags: <defaults>
</compile_context>

<pallas_src>
import functools

import jax
import jax.numpy as jnp
from jax.experimental import pallas as pl
from jax.experimental.pallas import tpu as pltpu


def _shortcut_kernel(sel_ref, x_ref, o_ref, *, c, pad, three_terms):
    """o[:, pad:pad+c, :] = x_flat @ sel ; o[:, :pad, :] = o[:, pad+c:, :] = 0."""
    nb = x_ref.shape[0]
    hw = x_ref.shape[-1]
    hwo = o_ref.shape[-1]

    # (nb, C, HW) -> (nb*C, HW): trivial regrouping (nb==1 or C is a multiple of
    # the sublane packing; enforced by the block picker below).
    x = x_ref[...].reshape(nb * c, hw)
    sel = sel_ref[...]                                   # (HW, HWo), bf16 0/1

    # Exact copy through the bf16 MXU: x = hi + mid + lo (each term bf16-exact),
    # sel entries are exactly representable in bf16, accumulation in f32.
    hi = x.astype(jnp.bfloat16)
    acc = jnp.dot(hi, sel, preferred_element_type=jnp.float32)
    if three_terms:                                      # f32 (and f16) inputs
        xf = x.astype(jnp.float32)
        r1 = xf - hi.astype(jnp.float32)
        mid = r1.astype(jnp.bfloat16)
        acc = acc + jnp.dot(mid, sel, preferred_element_type=jnp.float32)
        lo = (r1 - mid.astype(jnp.float32)).astype(jnp.bfloat16)
        acc = acc + jnp.dot(lo, sel, preferred_element_type=jnp.float32)

    y = acc.astype(o_ref.dtype).reshape(nb, c, hwo)
    if pad > 0:
        zeros = jnp.zeros((nb, pad, hwo), dtype=o_ref.dtype)
        o_ref[:, :pad, :] = zeros
        o_ref[:, pad + c:, :] = zeros
    o_ref[:, pad:pad + c, :] = y


def _pick_batch_block(n, c, per_elem_bytes, sel_bytes, sublane,
                      target_bytes=2 << 20):
    """Largest divisor of n whose per-step HBM traffic stays near target_bytes.

    Keeps >= 2 grid steps when n > 1 (so both v7x TensorCores get work) and
    falls back to nb=1 when C is not sublane-aligned (so the in-kernel
    (nb, C) <-> (nb*C) row regrouping stays a pure re-indexing).
    In-kernel temporaries are a small multiple of the input block, so a ~2 MiB
    per-step budget keeps total VMEM well inside the 16/32 MiB scoped defaults.
    """
    if c % sublane != 0:
        return 1
    best = 1
    for nb in range(1, n + 1):
        if n % nb:
            continue
        if n > 1 and nb > n // 2:
            continue
        if nb * per_elem_bytes + sel_bytes > target_bytes:
            continue
        best = nb
    return best


def lambda_layer(x, planes):
    """Pallas equivalent of LambdaLayer (option-A shortcut) for NCHW input."""
    N, C, H, W = x.shape
    # TODO(synk): PyTorch's x[:, :, ::2, ::2] takes ceil on odd H/W; this kernel
    # assumes the even CIFAR-ResNet spatial sizes.
    assert H % 2 == 0 and W % 2 == 0, "kernel assumes even H and W"
    pad = planes // 4
    H_out, W_out = H // 2, W // 2
    C_out = C + 2 * pad
    HW, HWo = H * W, H_out * W_out

    # 0/1 spatial-subsample matrix over the flattened spatial dim (bf16-exact).
    p = jnp.arange(HWo, dtype=jnp.int32)
    src = 2 * (p // W_out) * W + 2 * (p % W_out)                      # (HWo,)
    sel = (jnp.arange(HW, dtype=jnp.int32)[:, None] == src[None, :]
           ).astype(jnp.bfloat16)

    x3 = x.reshape(N, C, HW)                       # metadata-only reshape

    itemsize = x.dtype.itemsize
    sublane = {4: 8, 2: 16, 1: 32}.get(itemsize, 8)
    per_elem = (C * HW + C_out * HWo) * itemsize   # HBM bytes per batch element
    sel_bytes = sel.size * 2
    nb = _pick_batch_block(N, C, per_elem, sel_bytes, sublane)
    grid = (N // nb,)

    three_terms = x.dtype != jnp.bfloat16
    flops = 2 * N * C * HW * HWo * (3 if three_terms else 1)
    bytes_accessed = N * per_elem + sel_bytes

    kernel = functools.partial(_shortcut_kernel, c=C, pad=pad,
                               three_terms=three_terms)

    out3 = pl.pallas_call(
        kernel,
        out_shape=jax.ShapeDtypeStruct((N, C_out, HWo), x.dtype),
        grid=grid,
        in_specs=[
            # sel: same block every step -> fetched once, stays VMEM-resident.
            pl.BlockSpec((HW, HWo), lambda i: (0, 0)),
            # x: one contiguous batch block per step, spatial flat on lanes.
            pl.BlockSpec((nb, C, HW), lambda i: (i, 0, 0)),
        ],
        out_specs=pl.BlockSpec((nb, C_out, HWo), lambda i: (i, 0, 0)),
        compiler_params=pltpu.CompilerParams(
            dimension_semantics=("parallel",)),
        cost_estimate=pl.CostEstimate(flops=flops, transcendentals=0,
                                      bytes_accessed=bytes_accessed),
    )(sel, x3)

    return out3.reshape(N, C_out, H_out, W_out)    # metadata-only reshape


def _reference(x, planes):
    pad = planes // 4
    y = x[:, :, ::2, ::2]
    return jnp.pad(y, ((0, 0), (pad, pad), (0, 0), (0, 0)))


if __name__ == "__main__":
    key = jax.random.PRNGKey(0)
    # Shapes consistent with a CIFAR-ResNet option-A shortcut:
    # N=2, C_in=4, 16x16 spatial, downsampling into planes=8 output channels.
    N, C, H, W = 2, 4, 16, 16
    planes = 2 * C
    x = jax.random.normal(key, (N, C, H, W), dtype=jnp.float32)

    out = jax.block_until_ready(lambda_layer(x, planes))
    ref = _reference(x, planes)

    assert out.shape == ref.shape, (out.shape, ref.shape)
    assert out.dtype == x.dtype
    assert jnp.allclose(out, ref, rtol=1e-6, atol=1e-6), "mismatch vs reference"

    print("KERNEL_OK")
</pallas_src>

<mosaic_0001>
module attributes {stable_mosaic.version = 11 : i64} {
  func.func @_shortcut_kernel(%arg0: i32, %arg1: memref<256x64xbf16, #tpu.memory_space<vmem>>, %arg2: memref<1x4x256xf32, #tpu.memory_space<vmem>>, %arg3: memref<1x8x64xf32, #tpu.memory_space<vmem>>) attributes {dimension_semantics = [#tpu.dimension_semantics<parallel>], iteration_bounds = array<i64: 2>, scalar_prefetch = 0 : i64, scratch_operands = 0 : i64, tpu.core_type = #tpu.core_type<tc>, window_params = [{pipeline_mode = #tpu.pipeline_mode<synchronous>, transform_indices = @transform_0, window_bounds = array<i64: 256, 64>}, {transform_indices = @transform_1, window_bounds = array<i64: 1, 4, 256>}, {transform_indices = @transform_2, window_bounds = array<i64: 1, 8, 64>}]} {
    %c0 = arith.constant 0 : index
    %c0_0 = arith.constant 0 : index
    %c0_1 = arith.constant 0 : index
    %0 = vector.load %arg2[%c0, %c0_0, %c0_1] : memref<1x4x256xf32, #tpu.memory_space<vmem>>, vector<1x4x256xf32>
    %1 = vector.shape_cast %0 : vector<1x4x256xf32> to vector<4x256xf32>
    %c0_2 = arith.constant 0 : index
    %c0_3 = arith.constant 0 : index
    %2 = vector.load %arg1[%c0_2, %c0_3] : memref<256x64xbf16, #tpu.memory_space<vmem>>, vector<256x64xbf16>
    %3 = arith.truncf %1 : vector<4x256xf32> to vector<4x256xbf16>
    %cst = arith.constant dense<0.000000e+00> : vector<4x64xf32>
    %4 = tpu.matmul %3, %2, %cst {dimension_numbers = #tpu.dot_dimension_numbers<[1], [0], [0], [1], [0, 0, 1, 1], [], []>} : vector<4x256xbf16>, vector<256x64xbf16>, vector<4x64xf32> -> vector<4x64xf32>
    %5 = arith.extf %3 : vector<4x256xbf16> to vector<4x256xf32>
    %6 = arith.subf %1, %5 : vector<4x256xf32>
    %7 = arith.truncf %6 : vector<4x256xf32> to vector<4x256xbf16>
    %cst_4 = arith.constant dense<0.000000e+00> : vector<4x64xf32>
    %8 = tpu.matmul %7, %2, %cst_4 {dimension_numbers = #tpu.dot_dimension_numbers<[1], [0], [0], [1], [0, 0, 1, 1], [], []>} : vector<4x256xbf16>, vector<256x64xbf16>, vector<4x64xf32> -> vector<4x64xf32>
    %9 = arith.addf %4, %8 : vector<4x64xf32>
    %10 = arith.extf %7 : vector<4x256xbf16> to vector<4x256xf32>
    %11 = arith.subf %6, %10 : vector<4x256xf32>
    %12 = arith.truncf %11 : vector<4x256xf32> to vector<4x256xbf16>
    %cst_5 = arith.constant dense<0.000000e+00> : vector<4x64xf32>
    %13 = tpu.matmul %12, %2, %cst_5 {dimension_numbers = #tpu.dot_dimension_numbers<[1], [0], [0], [1], [0, 0, 1, 1], [], []>} : vector<4x256xbf16>, vector<256x64xbf16>, vector<4x64xf32> -> vector<4x64xf32>
    %14 = arith.addf %9, %13 : vector<4x64xf32>
    %15 = vector.shape_cast %14 : vector<4x64xf32> to vector<1x4x64xf32>
    %cst_6 = arith.constant 0.000000e+00 : f32
    %16 = vector.broadcast %cst_6 : f32 to vector<1x2x64xf32>
    %c0_7 = arith.constant 0 : index
    %c0_8 = arith.constant 0 : index
    %c0_9 = arith.constant 0 : index
    %17 = vector.load %arg3[%c0_7, %c0_8, %c0_9] : memref<1x8x64xf32, #tpu.memory_space<vmem>>, vector<1x2x64xf32>
    tpu.vector_store %arg3[%c0_7, %c0_8, %c0_9], %16 {strides = array<i32>} : memref<1x8x64xf32, #tpu.memory_space<vmem>>, vector<1x2x64xf32>,
    %c0_10 = arith.constant 0 : index
    %c6 = arith.constant 6 : index
    %c0_11 = arith.constant 0 : index
    %18 = vector.load %arg3[%c0_10, %c6, %c0_11] : memref<1x8x64xf32, #tpu.memory_space<vmem>>, vector<1x2x64xf32>
    tpu.vector_store %arg3[%c0_10, %c6, %c0_11], %16 {strides = array<i32>} : memref<1x8x64xf32, #tpu.memory_space<vmem>>, vector<1x2x64xf32>,
    %c0_12 = arith.constant 0 : index
    %c2 = arith.constant 2 : index
    %c0_13 = arith.constant 0 : index
    %19 = vector.load %arg3[%c0_12, %c2, %c0_13] : memref<1x8x64xf32, #tpu.memory_space<vmem>>, vector<1x4x64xf32>
    tpu.vector_store %arg3[%c0_12, %c2, %c0_13], %15 {strides = array<i32>} : memref<1x8x64xf32, #tpu.memory_space<vmem>>, vector<1x4x64xf32>,
    return
  }
  func.func @transform_0(%arg0: i32) -> (i32, i32) {
    %c0_i32 = arith.constant 0 : i32
    %c0_i32_0 = arith.constant 0 : i32
    %c0_i32_1 = arith.constant 0 : i32
    return %c0_i32, %c0_i32_0 : i32, i32
  }
  func.func @transform_1(%arg0: i32) -> (i32, i32, i32) {
    %c0_i32 = arith.constant 0 : i32
    %c0_i32_0 = arith.constant 0 : i32
    %c0_i32_1 = arith.constant 0 : i32
    return %arg0, %c0_i32, %c0_i32_0 : i32, i32, i32
  }
  func.func @transform_2(%arg0: i32) -> (i32, i32, i32) {
    %c0_i32 = arith.constant 0 : i32
    %c0_i32_0 = arith.constant 0 : i32
    %c0_i32_1 = arith.constant 0 : i32
    return %arg0, %c0_i32, %c0_i32_0 : i32, i32, i32
  }
}

</mosaic_0001>

<llo_original>
// kernel: tpu_custom_call.1
$region0: #{tpu_custom_call.1}
  #allocation0 [shape = 'u32[]', space=smem, size = 0x4, offset = 0x4, fixed_abs, tag = 'smem constant byte address 0x4 - core index']
  #allocation1 [shape = 'u32[144,128]{1,0:T(1,128)}', space=vmem, size = 0x12000, scoped, tag = 'internal scratch']
  %s0 = inlined_call_operand.vmem [shape: bf16[256,64], index: 0, kind: input, shape index: {}]
  %s1 = inlined_call_operand.vmem [shape: f32[2,4,256], index: 1, kind: input, shape index: {}]
  %s2 = inlined_call_operand.hbm [shape: f32[2,8,64], index: 2, kind: output, shape index: {}]
  %s3 = sld [smem:[#allocation0]]
  $region41: #{tpu_custom_call.1} parent=0
    _
  %s5 = ssub.s32 1, %s3
  %s6 = scalar_select 0, %s5, %s3
  $region1: #{tpu_custom_call.1} parent=0
    #allocation2 [shape = 'u8[8192]{0}', space=vmem, size = 0x2000, scoped, tag = 'output window, operand 0']
    #allocation3 [shape = 's32[2]{0}', space=sflag, size = 0x8, scoped, tag = 'scoped memory for tpu_custom_call.1']
    %7 = vsyncpa [#allocation3], 0
    %s8 = scalar_lea.sflag [#allocation3], 1
    %9 = vsyncpa %s8, 0
    loop: start=0, step=1, limit=4
    $region2: #{tpu_custom_call.1} parent=1 // loop_pre_header
      _
    $region3: #{tpu_custom_call.1} parent=1 // loop_header
      %s11 = sphi 0, %s15
      %p12 = scmp.ge.s32.totalorder %s11, 4
      %s19 = sphi 0, %s19
      %s21 = sphi 0, %s19
      %s22 = sphi 0, %s21
      %s36 = sphi 0, %s22
      %s42 = sphi 0, %s44
      %s45 = sphi 0, %s42
      %s46 = sphi 0, %s45
      %s62 = sphi 0, %s46
      %s68 = sphi 0, %s70
      %s71 = sphi 0, %s68
      %s72 = sphi 0, %s71
      %s88 = sphi 0, %s72
    $region4: #{tpu_custom_call.1} parent=1 // loop_header_branch
      %14 = sbr.rel (%p12) target = $region8
    $region5: #{tpu_custom_call.1} parent=1 // loop_body
      %s16 = ssub.s32 %s11, 1
      %s17 = ssub.s32 %s11, 2
      %s18 = sadd.s32 %s11, 1
      %s20 = sadd.s32 %s19, 1
      %p23 = scmp.eq.s32.totalorder %s11, 1
      %p24 = scmp.ne.s32.totalorder %s19, %s21
      %p25 = scmp.eq.s32.totalorder %s11, 0
      %p26 = por %p24, %p25
      %p27 = scmp.ne.s32.totalorder %s19, %s21
      %p28 = scmp.eq.s32.totalorder %s16, 1
      %p29 = por %p27, %p28
      %p30 = scmp.ne.s32.totalorder %s21, %s22
      %p31 = scmp.eq.s32.totalorder %s16, 0
      %p32 = por %p30, %p31
      %p33 = scmp.ne.s32.totalorder %s21, %s22
      %p34 = scmp.eq.s32.totalorder %s17, 1
      %p35 = por %p33, %p34
      %p37 = scmp.ne.s32.totalorder %s22, %s36
      %p38 = scmp.eq.s32.totalorder %s17, 0
      %p39 = por %p37, %p38
      %s40 = ssub.s32 %s11, %s18
      %p41 = scmp.eq.s32.totalorder %s40, 0
      %s43 = sadd.s32 %s42, 1
      %s44 = scalar_select %p41, %s42, %s43
      %p47 = pneg %p41
      %p48 = scmp.eq.s32.totalorder %s11, 1
      %p49 = por %p47, %p48
      %p50 = scmp.ne.s32.totalorder %s42, %s45
      %p51 = scmp.eq.s32.totalorder %s11, 0
      %p52 = por %p50, %p51
      %p53 = scmp.ne.s32.totalorder %s42, %s45
      %p54 = scmp.eq.s32.totalorder %s16, 1
      %p55 = por %p53, %p54
      %p56 = scmp.ne.s32.totalorder %s45, %s46
      %p57 = scmp.eq.s32.totalorder %s16, 0
      %p58 = por %p56, %p57
      %p59 = scmp.ne.s32.totalorder %s45, %s46
      %p60 = scmp.eq.s32.totalorder %s17, 1
      %p61 = por %p59, %p60
      %p63 = scmp.ne.s32.totalorder %s46, %s62
      %p64 = scmp.eq.s32.totalorder %s17, 0
      %p65 = por %p63, %p64
      %s66 = ssub.s32 %s11, %s18
      %p67 = scmp.eq.s32.totalorder %s66, 0
      %s69 = sadd.s32 %s68, 1
      %s70 = scalar_select %p67, %s68, %s69
      %p73 = pneg %p67
      %p74 = scmp.eq.s32.totalorder %s11, 1
      %p75 = por %p73, %p74
      %p76 = scmp.ne.s32.totalorder %s68, %s71
      %p77 = scmp.eq.s32.totalorder %s11, 0
      %p78 = por %p76, %p77
      %p79 = scmp.ne.s32.totalorder %s68, %s71
      %p80 = scmp.eq.s32.totalorder %s16, 1
      %p81 = por %p79, %p80
      %p82 = scmp.ne.s32.totalorder %s71, %s72
      %p83 = scmp.eq.s32.totalorder %s16, 0
      %p84 = por %p82, %p83
      %p85 = scmp.ne.s32.totalorder %s71, %s72
      %p86 = scmp.eq.s32.totalorder %s17, 1
      %p87 = por %p85, %p86
      %p89 = scmp.ne.s32.totalorder %s72, %s88
      %p90 = scmp.eq.s32.totalorder %s17, 0
      %p91 = por %p89, %p90
      %p92 = scmp.le.s32.totalorder 1, %s11
      %p93 = scmp.lt.s32.totalorder %s11, 3
      %p94 = pnand %p92, %p93
      %p95 = pneg %p94
      // Predicated region
      $region9: #{tpu_custom_call.1} parent=5 // pred_check
        _
      $region10: #{tpu_custom_call.1} parent=5 // pred_check_branch
        %97 = sbr.rel (%p94) target = $region12
      $region11: #{tpu_custom_call.1} parent=5 // pred_region
        %s98 = ssub.s32 %s11, 1
        // Predicated region
        $region13: #{tpu_custom_call.1} parent=11 // pred_check
          %p99 = pneg %p32
        $region14: #{tpu_custom_call.1} parent=11 // pred_check_branch
          %101 = sbr.rel (%p99) target = $region16
        $region15: #{tpu_custom_call.1} parent=11 // pred_region
          _
        $region16: #{tpu_custom_call.1} parent=11 // pred_fallthru
          _
      $region12: #{tpu_custom_call.1} parent=5 // pred_fallthru
        _
      %p102 = scmp.lt.s32.totalorder %s11, 2
      // Predicated region
      $region17: #{tpu_custom_call.1} parent=5 // pred_check
        %p103 = pneg %p102
      $region18: #{tpu_custom_call.1} parent=5 // pred_check_branch
        %105 = sbr.rel (%p103) target = $region20
      $region19: #{tpu_custom_call.1} parent=5 // pred_region
        // Predicated region
        $region21: #{tpu_custom_call.1} parent=19 // pred_check
          %p106 = pneg %p52
        $region22: #{tpu_custom_call.1} parent=19 // pred_check_branch
          %108 = sbr.rel (%p106) target = $region24
        $region23: #{tpu_custom_call.1} parent=19 // pred_region
          %p109 = scmp.lt.s32.totalorder %s11, 1
          %s110 = scalar_select %p109, %s11, 1
          %s111 = smul.addr %s110, 2
          %s112 = smul.addr %s111, 4
          %s113 = scalar_lea.vmem %s1, %s112
        $region24: #{tpu_custom_call.1} parent=19 // pred_fallthru
          _
      $region20: #{tpu_custom_call.1} parent=5 // pred_fallthru
        _
      %p114 = scmp.le.s32.totalorder 1, %s11
      %p115 = scmp.lt.s32.totalorder %s11, 3
      %p116 = pnand %p114, %p115
      %p117 = pneg %p116
      // Predicated region
      $region25: #{tpu_custom_call.1} parent=5 // pred_check
        _
      $region26: #{tpu_custom_call.1} parent=5 // pred_check_branch
        %119 = sbr.rel (%p116) target = $region28
      $region27: #{tpu_custom_call.1} parent=5 // pred_region
        %s120 = ssub.s32 %s11, 1
        %p121 = pneg %p32
        %p122 = pneg %p29
        %p123 = scmp.lt.s32.totalorder %s16, 1
        %s124 = scalar_select %p123, %s16, 1
        %s125 = smul.addr %s124, 2
        %s126 = smul.addr %s125, 4
        %s127 = scalar_lea.vmem %s1, %s126
        %p128 = pneg %p58
        %p129 = pneg %p55
        %p130 = pneg %p84
        %p131 = pneg %p81
        %s132 = sand.u32 %s71, 1
        %s133 = scalar_lea.sflag [#allocation3], %s132
        %s134 = sand.u32 %s71, 1
        %s135 = smul.addr %s134, 8
        %s136 = scalar_lea.vmem [#allocation2], %s135
        %p137 = scmp.lt.s32.totalorder %s16, 1
        %s138 = scalar_select %p137, %s16, 1
        %s139 = smul.addr %s138, 2
        %s140 = smul.addr %s139, 4
        %s141 = scalar_lea.vmem %s1, %s140
        %v143 = vld [vmem:[%s141] sm:$0xff]
        %v144 = vld [vmem:[%s0] sm:$0xf]
        %v145 = vld [vmem:[%s0 + $0x4] sm:$0xf]
        %v146 = vld [vmem:[%s0 + $0x8] sm:$0xf]
        %v147 = vld [vmem:[%s0 + $0xc] sm:$0xf]
        %v148 = vld [vmem:[%s0 + $0x10] sm:$0xf]
        %v149 = vld [vmem:[%s0 + $0x14] sm:$0xf]
        %v150 = vld [vmem:[%s0 + $0x18] sm:$0xf]
        %v151 = vld [vmem:[%s0 + $0x1c] sm:$0xf]
        %v152 = vld [vmem:[%s0 + $0x20] sm:$0xf]
        %v153 = vld [vmem:[%s0 + $0x24] sm:$0xf]
        %v154 = vld [vmem:[%s0 + $0x28] sm:$0xf]
        %v155 = vld [vmem:[%s0 + $0x2c] sm:$0xf]
        %v156 = vld [vmem:[%s0 + $0x30] sm:$0xf]
        %v157 = vld [vmem:[%s0 + $0x34] sm:$0xf]
        %v158 = vld [vmem:[%s0 + $0x38] sm:$0xf]
        %v159 = vld [vmem:[%s0 + $0x3c] sm:$0xf]
        %v160 = vld [vmem:[%s0 + $0x40] sm:$0xf]
        %v161 = vld [vmem:[%s0 + $0x44] sm:$0xf]
        %v162 = vld [vmem:[%s0 + $0x48] sm:$0xf]
        %v163 = vld [vmem:[%s0 + $0x4c] sm:$0xf]
        %v164 = vld [vmem:[%s0 + $0x50] sm:$0xf]
        %v165 = vld [vmem:[%s0 + $0x54] sm:$0xf]
        %v166 = vld [vmem:[%s0 + $0x58] sm:$0xf]
        %v167 = vld [vmem:[%s0 + $0x5c] sm:$0xf]
        %v168 = vld [vmem:[%s0 + $0x60] sm:$0xf]
        %v169 = vld [vmem:[%s0 + $0x64] sm:$0xf]
        %v170 = vld [vmem:[%s0 + $0x68] sm:$0xf]
        %v171 = vld [vmem:[%s0 + $0x6c] sm:$0xf]
        %v172 = vld [vmem:[%s0 + $0x70] sm:$0xf]
        %v173 = vld [vmem:[%s0 + $0x74] sm:$0xf]
        %v174 = vld [vmem:[%s0 + $0x78] sm:$0xf]
        %v175 = vld [vmem:[%s0 + $0x7c] sm:$0xf]
        %v177 = vcombine.high %v143, %v143
        %v179 = vpack.c.bf16 %v143, %v143
        %v180 = vpack.c.bf16 %v177, %v177
        %v181 = vunpack.c.l.bf16 %v179
        %v182 = vunpack.c.l.bf16 %v180
        %v185 = vcombine.low %v181, %v182
        %v187 = vsub.f32 %v143, %v185
        %v189 = vcombine.high %v187, %v187
        %v191 = vpack.c.bf16 %v187, %v187
        %v192 = vpack.c.bf16 %v189, %v189
        %v225 = vunpack.c.l.b16 %v144
        %v226 = vunpack.c.l.b16 %v145
        %v227 = vunpack.c.l.b16 %v146
        %v228 = vunpack.c.l.b16 %v147
        %v229 = vunpack.c.l.b16 %v148
        %v230 = vunpack.c.l.b16 %v149
        %v231 = vunpack.c.l.b16 %v150
        %v232 = vunpack.c.l.b16 %v151
        %v233 = vunpack.c.l.b16 %v152
        %v234 = vunpack.c.l.b16 %v153
        %v235 = vunpack.c.l.b16 %v154
        %v236 = vunpack.c.l.b16 %v155
        %v237 = vunpack.c.l.b16 %v156
        %v238 = vunpack.c.l.b16 %v157
        %v239 = vunpack.c.l.b16 %v158
        %v240 = vunpack.c.l.b16 %v159
        %v241 = vunpack.c.l.b16 %v160
        %v242 = vunpack.c.l.b16 %v161
        %v243 = vunpack.c.l.b16 %v162
        %v244 = vunpack.c.l.b16 %v163
        %v245 = vunpack.c.l.b16 %v164
        %v246 = vunpack.c.l.b16 %v165
        %v247 = vunpack.c.l.b16 %v166
        %v248 = vunpack.c.l.b16 %v167
        %v249 = vunpack.c.l.b16 %v168
        %v250 = vunpack.c.l.b16 %v169
        %v251 = vunpack.c.l.b16 %v170
        %v252 = vunpack.c.l.b16 %v171
        %v253 = vunpack.c.l.b16 %v172
        %v254 = vunpack.c.l.b16 %v173
        %v255 = vunpack.c.l.b16 %v174
        %v256 = vunpack.c.l.b16 %v175
        %v257 = vpack.c.b16 %v226, %v225
        %v258 = vpack.c.b16 %v228, %v227
        %v259 = vpack.c.b16 %v230, %v229
        %v260 = vpack.c.b16 %v232, %v231
        %v261 = vpack.c.b16 %v234, %v233
        %v262 = vpack.c.b16 %v236, %v235
        %v263 = vpack.c.b16 %v238, %v237
        %v264 = vpack.c.b16 %v240, %v239
        %v265 = vpack.c.b16 %v242, %v241
        %v266 = vpack.c.b16 %v244, %v243
        %v267 = vpack.c.b16 %v246, %v245
        %v268 = vpack.c.b16 %v248, %v247
        %v269 = vpack.c.b16 %v250, %v249
        %v270 = vpack.c.b16 %v252, %v251
        %v271 = vpack.c.b16 %v254, %v253
        %v272 = vpack.c.b16 %v256, %v255
        %289 = vmatprep.subr.bf16.mxu0 0
        %290 = vmatpush1.bf16.msra.mxu0 %v257
        %291 = vmatprep.subr.bf16.mxu0 0
        %292 = vmatpush1.bf16.msra.mxu0 %v258
        %293 = vmatprep.subr.bf16.mxu0 0
        %294 = vmatpush1.bf16.msra.mxu0 %v259
        %295 = vmatprep.subr.bf16.mxu0 0
        %296 = vmatpush1.bf16.msra.mxu0 %v260
        %297 = vmatprep.subr.bf16.mxu0 0
        %298 = vmatpush1.bf16.msra.mxu0 %v261
        %299 = vmatprep.subr.bf16.mxu0 0
        %300 = vmatpush1.bf16.msra.mxu0 %v262
        %301 = vmatprep.subr.bf16.mxu0 0
        %302 = vmatpush1.bf16.msra.mxu0 %v263
        %303 = vmatprep.subr.bf16.mxu0 0
        %304 = vmatpush1.bf16.msra.mxu0 %v264
        %305 = vmatprep.subr.bf16.mxu0 0
        %306 = vmatpush1.bf16.msra.mxu0 %v265
        %307 = vmatprep.subr.bf16.mxu0 0
        %308 = vmatpush1.bf16.msra.mxu0 %v266
        %309 = vmatprep.subr.bf16.mxu0 0
        %310 = vmatpush1.bf16.msra.mxu0 %v267
        %311 = vmatprep.subr.bf16.mxu0 0
        %312 = vmatpush1.bf16.msra.mxu0 %v268
        %313 = vmatprep.subr.bf16.mxu0 0
        %314 = vmatpush1.bf16.msra.mxu0 %v269
        %315 = vmatprep.subr.bf16.mxu0 0
        %316 = vmatpush1.bf16.msra.mxu0 %v270
        %317 = vmatprep.subr.bf16.mxu0 0
        %318 = vmatpush1.bf16.msra.mxu0 %v271
        %319 = vmatprep.subr.bf16.mxu0 0
        %320 = vmatpush1.bf16.msra.mxu0 %v272
        %321 = vmatprep.mubr.bf16.mxu0 %v192
        %322 = vmatmul.mubr.bf16.gmra.mrb[0].mxu0 %v191
        %v323 = vpop.f32.mrb[0].mxu0
        %v324 = vadd.f32 0.0, %v323
        %v325 = vpop.f32.mrb[0].mxu0
        %v326 = vpop.f32.mrb[0].mxu0
        %v327 = vpop.f32.mrb[0].mxu0
        %328 = vdwg.mxu0
        %329 = vmatprep.subr.bf16.mxu0 0
        %330 = vmatpush1.bf16.msra.mxu0 %v257
        %331 = vmatprep.subr.bf16.mxu0 0
        %332 = vmatpush1.bf16.msra.mxu0 %v258
        %333 = vmatprep.subr.bf16.mxu0 0
        %334 = vmatpush1.bf16.msra.mxu0 %v259
        %335 = vmatprep.subr.bf16.mxu0 0
        %336 = vmatpush1.bf16.msra.mxu0 %v260
        %337 = vmatprep.subr.bf16.mxu0 0
        %338 = vmatpush1.bf16.msra.mxu0 %v261
        %339 = vmatprep.subr.bf16.mxu0 0
        %340 = vmatpush1.bf16.msra.mxu0 %v262
        %341 = vmatprep.subr.bf16.mxu0 0
        %342 = vmatpush1.bf16.msra.mxu0 %v263
        %343 = vmatprep.subr.bf16.mxu0 0
        %344 = vmatpush1.bf16.msra.mxu0 %v264
        %345 = vmatprep.subr.bf16.mxu0 0
        %346 = vmatpush1.bf16.msra.mxu0 %v265
        %347 = vmatprep.subr.bf16.mxu0 0
        %348 = vmatpush1.bf16.msra.mxu0 %v266
        %349 = vmatprep.subr.bf16.mxu0 0
        %350 = vmatpush1.bf16.msra.mxu0 %v267
        %351 = vmatprep.subr.bf16.mxu0 0
        %352 = vmatpush1.bf16.msra.mxu0 %v268
        %353 = vmatprep.subr.bf16.mxu0 0
        %354 = vmatpush1.bf16.msra.mxu0 %v269
        %355 = vmatprep.subr.bf16.mxu0 0
        %356 = vmatpush1.bf16.msra.mxu0 %v270
        %357 = vmatprep.subr.bf16.mxu0 0
        %358 = vmatpush1.bf16.msra.mxu0 %v271
        %359 = vmatprep.subr.bf16.mxu0 0
        %360 = vmatpush1.bf16.msra.mxu0 %v272
        %361 = vmatprep.mubr.bf16.mxu0 %v180
        %362 = vmatmul.mubr.bf16.gmra.mrb[0].mxu0 %v179
        %v363 = vpop.f32.mrb[0].mxu0
        %v364 = vadd.f32 %v324, %v363
        %v365 = vpop.f32.mrb[0].mxu0
        %v366 = vpop.f32.mrb[0].mxu0
        %v367 = vpop.f32.mrb[0].mxu0
        %368 = vdwg.mxu0
        %v369 = vunpack.c.l.bf16 %v191
        %v370 = vunpack.c.l.bf16 %v192
        %v373 = vcombine.low %v369, %v370
        %v375 = vsub.f32 %v187, %v373
        %v377 = vcombine.high %v375, %v375
        %v379 = vpack.c.bf16 %v375, %v375
        %v380 = vpack.c.bf16 %v377, %v377
        %381 = vmatprep.subr.bf16.mxu0 0
        %382 = vmatpush1.bf16.msra.mxu0 %v257
        %383 = vmatprep.subr.bf16.mxu0 0
        %384 = vmatpush1.bf16.msra.mxu0 %v258
        %385 = vmatprep.subr.bf16.mxu0 0
        %386 = vmatpush1.bf16.msra.mxu0 %v259
        %387 = vmatprep.subr.bf16.mxu0 0
        %388 = vmatpush1.bf16.msra.mxu0 %v260
        %389 = vmatprep.subr.bf16.mxu0 0
        %390 = vmatpush1.bf16.msra.mxu0 %v261
        %391 = vmatprep.subr.bf16.mxu0 0
        %392 = vmatpush1.bf16.msra.mxu0 %v262
        %393 = vmatprep.subr.bf16.mxu0 0
        %394 = vmatpush1.bf16.msra.mxu0 %v263
        %395 = vmatprep.subr.bf16.mxu0 0
        %396 = vmatpush1.bf16.msra.mxu0 %v264
        %397 = vmatprep.subr.bf16.mxu0 0
        %398 = vmatpush1.bf16.msra.mxu0 %v265
        %399 = vmatprep.subr.bf16.mxu0 0
        %400 = vmatpush1.bf16.msra.mxu0 %v266
        %401 = vmatprep.subr.bf16.mxu0 0
        %402 = vmatpush1.bf16.msra.mxu0 %v267
        %403 = vmatprep.subr.bf16.mxu0 0
        %404 = vmatpush1.bf16.msra.mxu0 %v268
        %405 = vmatprep.subr.bf16.mxu0 0
        %406 = vmatpush1.bf16.msra.mxu0 %v269
        %407 = vmatprep.subr.bf16.mxu0 0
        %408 = vmatpush1.bf16.msra.mxu0 %v270
        %409 = vmatprep.subr.bf16.mxu0 0
        %410 = vmatpush1.bf16.msra.mxu0 %v271
        %411 = vmatprep.subr.bf16.mxu0 0
        %412 = vmatpush1.bf16.msra.mxu0 %v272
        %413 = vmatprep.mubr.bf16.mxu0 %v380
        %414 = vmatmul.mubr.bf16.gmra.mrb[0].mxu0 %v379
        %v415 = vpop.f32.mrb[0].mxu0
        %v416 = vadd.f32 0.0, %v415
        %v417 = vpop.f32.mrb[0].mxu0
        %v418 = vpop.f32.mrb[0].mxu0
        %v419 = vpop.f32.mrb[0].mxu0
        %420 = vdwg.mxu0
        %v421 = vadd.f32 %v364, %v416
        %vm422 = vcmask 517120
        %423 = vst.msk [vmem:[%s136] sm:$0x3] %vm422, 0.0
        %424 = vst.msk [vmem:[%s136 + $0x6] sm:$0x3] %vm422, 0.0
        %vm425 = vcmask 519168
        %426 = vst.msk [vmem:[%s136 + $0x2] sm:$0xf] %vm425, %v421
        %s427 = sand.u32 %s71, 1
        %s428 = scalar_lea.sflag [#allocation3], %s427
        %s429 = sand.u32 %s71, 1
        %s430 = smul.addr %s429, 8
        %s431 = scalar_lea.vmem [#allocation2], %s430
        // Predicated region
        $region29: #{tpu_custom_call.1} parent=27 // pred_check
          %p432 = pneg %p81
        $region30: #{tpu_custom_call.1} parent=27 // pred_check_branch
          %434 = sbr.rel (%p432) target = $region32
        $region31: #{tpu_custom_call.1} parent=27 // pred_region
          %s436 = ssub.s32 128, 128
          %437 = vsyncadd %s428, %s436
          %s438 = smul.addr %s16, 128
          %s439 = scalar_lea.hbm %s2, %s438
          %s441 = sshll.u32 %s431, 4
          %s442 = int_to_ptr.vmem [resolvable:$true] %s441
          %444 = dma.vmem_to_hbm [thread:$0]  %s442, 128, %s439, %s428
        $region32: #{tpu_custom_call.1} parent=27 // pred_fallthru
          _
      $region28: #{tpu_custom_call.1} parent=5 // pred_fallthru
        _
      %p445 = scmp.le.s32.totalorder 2, %s11
      // Predicated region
      $region33: #{tpu_custom_call.1} parent=5 // pred_check
        %p446 = pneg %p445
      $region34: #{tpu_custom_call.1} parent=5 // pred_check_branch
        %448 = sbr.rel (%p446) target = $region36
      $region35: #{tpu_custom_call.1} parent=5 // pred_region
        %s449 = ssub.s32 %s11, 2
        // Predicated region
        $region37: #{tpu_custom_call.1} parent=35 // pred_check
          %p450 = pneg %p87
        $region38: #{tpu_custom_call.1} parent=35 // pred_check_branch
          %452 = sbr.rel (%p450) target = $region40
        $region39: #{tpu_custom_call.1} parent=35 // pred_region
          %s453 = sand.u32 %s72, 1
          %s454 = scalar_lea.sflag [#allocation3], %s453
          %s455 = sand.u32 %s72, 1
          %s456 = smul.addr %s455, 8
          %s457 = scalar_lea.vmem [#allocation2], %s456
          %458 = dma.done %s454, 128
        $region40: #{tpu_custom_call.1} parent=35 // pred_fallthru
          _
      $region36: #{tpu_custom_call.1} parent=5 // pred_fallthru
        _
    $region6: #{tpu_custom_call.1} parent=1 // loop_footer
      %s15 = sadd.s32 1, %s11
    $region7: #{tpu_custom_call.1} parent=1 // loop_footer_branch
      %10 = sbr.rel target = $region3
    $region8: #{tpu_custom_call.1} parent=1 // loop_exit
      _
    %459 = vsyncpa [#allocation3], 1
    %s460 = scalar_lea.sflag [#allocation3], 1
    %461 = vsyncpa %s460, 1

</llo_original>
